<compile_context>
chip_gen: v6e
topology: v6e:2x2x1
jax: 0.10.0
libtpu: 0.0.40
codegen_flags: <defaults>
</compile_context>

<pallas_src>
import functools

import jax
import jax.numpy as jnp
from jax.experimental import pallas as pl
from jax.experimental.pallas import tpu as pltpu

_MIB = 1024 * 1024


def _round_up(x, m):
    return ((x + m - 1) // m) * m


def _vmem_budget_bytes():
    """Scoped-VMEM budget with headroom below the physical capacity."""
    cap = 64 * _MIB                       # assume the smallest (v7x) if the query fails
    try:
        info = pltpu.get_tpu_info()
        cap = int(getattr(info, "vmem_capacity_bytes", cap))
        if cap <= 0:
            cap = 64 * _MIB
    except Exception:
        pass
    # ~48 MiB on v7x (64 MiB physical), ~96 MiB on v5e/v6e (128 MiB physical).
    return min(cap * 3 // 4, 96 * _MIB)


def _working_set_bytes(tm, K, E, in_isz, out_isz):
    """Pipelined VMEM working set (double buffering already included)."""
    return (2 * tm * K * in_isz           # patches tile, double buffered
            + 2 * tm * E * out_isz        # output tile, double buffered
            + 2 * K * E * in_isz          # weight (constant index map)
            + 2 * E * 4)                  # bias (f32)


def _select_row_tile(M, K, E, in_isz, out_isz, tile_budget):
    """Row tile: as large as the VMEM budget allows, MXU/sublane aligned."""
    min_sub = 8 * max(1, 4 // in_isz)     # f32: 8, bf16: 16, int8/fp8: 32
    if M <= min_sub:
        return M                          # single full-M block (always legal)
    m_aligned = (M // min_sub) * min_sub  # largest aligned tm not exceeding M
    gran = 256 if m_aligned >= 256 else min_sub
    tm = min(1024, m_aligned)
    tm -= tm % gran
    while tm > gran and _working_set_bytes(tm, K, E, in_isz, out_isz) > tile_budget:
        tm -= gran
    while tm > min_sub and _working_set_bytes(tm, K, E, in_isz, out_isz) > tile_budget:
        tm -= min_sub
    # v7x has 2 TensorCores: when a single tile would cover the whole problem
    # but there is enough work, halve it so the parallel grid has >= 2 programs.
    if tm == M and tm >= 512:
        tm = _round_up((M + 1) // 2, gran)
    return max(tm, min_sub)


def _patch_embed_kernel(patches_ref, w_ref, b_ref, out_ref):
    # Hot path: (tm, K) @ (K, E) on the MXU with f32 accumulation, + f32 bias.
    acc = jnp.dot(patches_ref[...], w_ref[...],
                  preferred_element_type=jnp.float32)
    out_ref[...] = (acc + b_ref[...]).astype(out_ref.dtype)


def patch_embedding_forward(im, weight, bias, patch_size,
                            compute_dtype=jnp.float32):
    """im: (B, C, H, W); weight: (E, C, P, P); bias: (E,).

    Returns (B, num_patches, E), identical to `proj(im).flatten(2).transpose(1, 2)`.
    compute_dtype=jnp.bfloat16 is recommended on v5e/v6e/v7x (f32 accumulation
    and f32 bias add are kept regardless).
    """
    B, C, H, W = im.shape
    P = patch_size
    E = weight.shape[0]
    assert H % P == 0 and W % P == 0, "image dims must be divisible by patch size"
    Hp, Wp = H // P, W // P
    N = Hp * Wp
    K = C * P * P
    M = B * N

    out_dtype = im.dtype
    in_isz = jnp.dtype(compute_dtype).itemsize
    out_isz = jnp.dtype(out_dtype).itemsize

    budget = _vmem_budget_bytes()
    tile_budget = max(8 * _MIB, budget - 8 * _MIB)
    tm = _select_row_tile(M, K, E, in_isz, out_isz, tile_budget)
    grid_m = pl.cdiv(M, tm)

    # --- patch extraction: cast first (narrower intermediate), then a single
    # reshape/transpose pass; no zero padding of M, K or E anywhere. ----------
    x = im.astype(compute_dtype)
    patches = x.reshape(B, C, Hp, P, Wp, P).transpose(0, 2, 4, 1, 3, 5).reshape(M, K)

    w2d = weight.reshape(E, K).T.astype(compute_dtype)   # (K, E), (c, kh, kw) order
    b2d = bias.astype(jnp.float32).reshape(1, E)

    cost = pl.CostEstimate(
        flops=2 * M * K * E,
        transcendentals=0,
        bytes_accessed=(M * K * in_isz + K * E * in_isz + E * 4
                        + M * E * out_isz),
    )
    ws = _working_set_bytes(tm, K, E, in_isz, out_isz)
    vmem_limit = int(min(budget, max(32 * _MIB, ws + 4 * _MIB)))

    out2d = pl.pallas_call(
        _patch_embed_kernel,
        out_shape=jax.ShapeDtypeStruct((M, E), out_dtype),
        grid_spec=pltpu.PrefetchScalarGridSpec(
            num_scalar_prefetch=0,
            grid=(grid_m,),
            in_specs=[
                pl.BlockSpec((tm, K), lambda i: (i, 0)),   # patches row tile
                pl.BlockSpec((K, E), lambda i: (0, 0)),    # full weight, resident
                pl.BlockSpec((1, E), lambda i: (0, 0)),    # bias, resident
            ],
            out_specs=pl.BlockSpec((tm, E), lambda i: (i, 0)),
        ),
        compiler_params=pltpu.CompilerParams(
            dimension_semantics=("parallel",),
            vmem_limit_bytes=vmem_limit,
            allow_input_fusion=[True, False, False],
        ),
        cost_estimate=cost,
    )(patches, w2d, b2d)

    return out2d.reshape(B, N, E)


def reference_forward(im, weight, bias, patch_size):
    """Pure-JAX reference of the PyTorch forward (strided conv)."""
    out = jax.lax.conv_general_dilated(
        im, weight,
        window_strides=(patch_size, patch_size),
        padding="VALID",
        dimension_numbers=("NCHW", "OIHW", "NCHW"),
    ) + bias[None, :, None, None]
    B, E, Hp, Wp = out.shape
    return out.reshape(B, E, Hp * Wp).transpose(0, 2, 1)


def _make_inputs(key, B, C, HW, P, E):
    k_im, k_w, k_b = jax.random.split(key, 3)
    im = jax.random.normal(k_im, (B, C, HW, HW), dtype=jnp.float32)
    weight = jax.random.normal(k_w, (E, C, P, P), dtype=jnp.float32) * 0.05
    bias = jax.random.normal(k_b, (E,), dtype=jnp.float32) * 0.01
    return im, weight, bias


if __name__ == "__main__":
    root = jax.random.PRNGKey(0)
    key1, key2 = jax.random.split(root, 2)

    # Config 1: module-consistent small shapes (B=2, C=4, 16x16, P=4, E=32).
    B, C, HW, P, E = 2, 4, 16, 4, 32
    im, weight, bias = _make_inputs(key1, B, C, HW, P, E)
    fwd = jax.jit(functools.partial(patch_embedding_forward, patch_size=P))
    out = jax.block_until_ready(fwd(im, weight, bias))
    ref = reference_forward(im, weight, bias, P)
    N = (HW // P) ** 2
    assert out.shape == (B, N, E)
    assert jnp.allclose(out, ref, atol=2e-4, rtol=2e-4), (
        float(jnp.max(jnp.abs(out - ref))))

    # Config 2: non-multiple-of-128 K and E (K=48, E=48), larger row count
    # (M = 128), exercises the unpadded full-dim K/E blocks.
    B2, C2, HW2, P2, E2 = 2, 3, 32, 4, 48
    im2, w2, b2 = _make_inputs(key2, B2, C2, HW2, P2, E2)
    fwd2 = jax.jit(functools.partial(patch_embedding_forward, patch_size=P2))
    out2 = jax.block_until_ready(fwd2(im2, w2, b2))
    ref2 = reference_forward(im2, w2, b2, P2)
    assert out2.shape == (B2, (HW2 // P2) ** 2, E2)
    assert jnp.allclose(out2, ref2, atol=2e-4, rtol=2e-4), (
        float(jnp.max(jnp.abs(out2 - ref2))))

    # Config 3: bf16 compute path (recommended on all generations), f32 accum.
    fwd_bf16 = jax.jit(functools.partial(
        patch_embedding_forward, patch_size=P, compute_dtype=jnp.bfloat16))
    out_bf16 = jax.block_until_ready(fwd_bf16(im, weight, bias))
    assert out_bf16.shape == (B, N, E)
    assert jnp.allclose(out_bf16, ref, atol=5e-2, rtol=5e-2), (
        float(jnp.max(jnp.abs(out_bf16 - ref))))

    print("KERNEL_OK")
</pallas_src>

<mosaic_0001>
module attributes {stable_mosaic.version = 11 : i64} {
  func.func @_patch_embed_kernel(%arg0: i32, %arg1: memref<32x64xf32, #tpu.memory_space<vmem>>, %arg2: memref<64x32xf32, #tpu.memory_space<vmem>>, %arg3: memref<1x32xf32, #tpu.memory_space<vmem>>, %arg4: memref<32x32xf32, #tpu.memory_space<vmem>>) attributes {dimension_semantics = [#tpu.dimension_semantics<parallel>], iteration_bounds = array<i64: 1>, scalar_prefetch = 0 : i64, scratch_operands = 0 : i64, tpu.core_type = #tpu.core_type<tc>, window_params = [{transform_indices = @transform_0, window_bounds = array<i64: 32, 64>}, {pipeline_mode = #tpu.pipeline_mode<synchronous>, transform_indices = @transform_1, window_bounds = array<i64: 64, 32>}, {pipeline_mode = #tpu.pipeline_mode<synchronous>, transform_indices = @transform_2, window_bounds = array<i64: 1, 32>}, {transform_indices = @transform_3, window_bounds = array<i64: 32, 32>}]} {
    %c0 = arith.constant 0 : index
    %c0_0 = arith.constant 0 : index
    %0 = vector.load %arg1[%c0, %c0_0] : memref<32x64xf32, #tpu.memory_space<vmem>>, vector<32x64xf32>
    %c0_1 = arith.constant 0 : index
    %c0_2 = arith.constant 0 : index
    %1 = vector.load %arg2[%c0_1, %c0_2] : memref<64x32xf32, #tpu.memory_space<vmem>>, vector<64x32xf32>
    %cst = arith.constant dense<0.000000e+00> : vector<32x32xf32>
    %2 = tpu.matmul %0, %1, %cst {dimension_numbers = #tpu.dot_dimension_numbers<[1], [0], [0], [1], [0, 0, 1, 1], [], []>} : vector<32x64xf32>, vector<64x32xf32>, vector<32x32xf32> -> vector<32x32xf32>
    %c0_3 = arith.constant 0 : index
    %c0_4 = arith.constant 0 : index
    %3 = vector.load %arg3[%c0_3, %c0_4] : memref<1x32xf32, #tpu.memory_space<vmem>>, vector<1x32xf32>
    %4 = vector.broadcast %3 : vector<1x32xf32> to vector<32x32xf32>
    %5 = arith.addf %2, %4 : vector<32x32xf32>
    %c0_5 = arith.constant 0 : index
    %c0_6 = arith.constant 0 : index
    %6 = vector.load %arg4[%c0_5, %c0_6] : memref<32x32xf32, #tpu.memory_space<vmem>>, vector<32x32xf32>
    tpu.vector_store %arg4[%c0_5, %c0_6], %5 {strides = array<i32>} : memref<32x32xf32, #tpu.memory_space<vmem>>, vector<32x32xf32>,
    return
  }
  func.func @transform_0(%arg0: i32) -> (i32, i32) {
    %c0_i32 = arith.constant 0 : i32
    %c0_i32_0 = arith.constant 0 : i32
    return %arg0, %c0_i32 : i32, i32
  }
  func.func @transform_1(%arg0: i32) -> (i32, i32) {
    %c0_i32 = arith.constant 0 : i32
    %c0_i32_0 = arith.constant 0 : i32
    %c0_i32_1 = arith.constant 0 : i32
    return %c0_i32, %c0_i32_0 : i32, i32
  }
  func.func @transform_2(%arg0: i32) -> (i32, i32) {
    %c0_i32 = arith.constant 0 : i32
    %c0_i32_0 = arith.constant 0 : i32
    %c0_i32_1 = arith.constant 0 : i32
    return %c0_i32, %c0_i32_0 : i32, i32
  }
  func.func @transform_3(%arg0: i32) -> (i32, i32) {
    %c0_i32 = arith.constant 0 : i32
    %c0_i32_0 = arith.constant 0 : i32
    return %arg0, %c0_i32 : i32, i32
  }
}

</mosaic_0001>

<llo_original>
// kernel: patch_embedding_forward.1
$region0: #{patch_embedding_forward.1}
  #allocation0 [shape = 'u32[]', space=smem, size = 0x4, offset = 0x4, fixed_abs, tag = 'smem constant byte address 0x4 - core index']
  #allocation1 [shape = 'u32[144,128]{1,0:T(1,128)}', space=vmem, size = 0x12000, scoped, tag = 'internal scratch']
  %s0 = inlined_call_operand.vmem [shape: f32[32,64], index: 0, kind: input, shape index: {}]
  %s1 = inlined_call_operand.vmem [shape: f32[64,32], index: 1, kind: input, shape index: {}]
  %s2 = inlined_call_operand.vmem [shape: f32[1,32], index: 2, kind: input, shape index: {}]
  %s3 = inlined_call_operand.hbm [shape: f32[32,32], index: 3, kind: output, shape index: {}]
  %s4 = sld [smem:[#allocation0]]
  $region22: #{patch_embedding_forward.1} parent=0
    _
  %s6 = ssub.s32 1, %s4
  %s7 = scalar_select 0, %s6, %s4
  $region1: #{patch_embedding_forward.1} parent=0
    #allocation2 [shape = 'u8[16384]{0}', space=vmem, size = 0x4000, scoped, tag = 'output window, operand 0, single buffered']
    #allocation3 [shape = 's32[1]{0}', space=sflag, size = 0x4, scoped, tag = 'scoped memory for patch_embedding_forward.1']
    %8 = vsyncpa [#allocation3], 0
    // Predicated region
    $region2: #{patch_embedding_forward.1} parent=1 // pred_check
      _
    $region3: #{patch_embedding_forward.1} parent=1 // pred_check_branch
      %10 = sbr.rel (0) target = $region5
    $region4: #{patch_embedding_forward.1} parent=1 // pred_region
      _
    $region5: #{patch_embedding_forward.1} parent=1 // pred_fallthru
      _
    // Predicated region
    $region6: #{patch_embedding_forward.1} parent=1 // pred_check
      _
    $region7: #{patch_embedding_forward.1} parent=1 // pred_check_branch
      %12 = sbr.rel (0) target = $region9
    $region8: #{patch_embedding_forward.1} parent=1 // pred_region
      _
    $region9: #{patch_embedding_forward.1} parent=1 // pred_fallthru
      _
    // Predicated region
    $region10: #{patch_embedding_forward.1} parent=1 // pred_check
      _
    $region11: #{patch_embedding_forward.1} parent=1 // pred_check_branch
      %14 = sbr.rel (0) target = $region13
    $region12: #{patch_embedding_forward.1} parent=1 // pred_region
      _
    $region13: #{patch_embedding_forward.1} parent=1 // pred_fallthru
      _
    %v15 = vld [vmem:[%s0] sm:$0xff]
    %v16 = vld [vmem:[%s0 + $0x8] sm:$0xff]
    %v17 = vld [vmem:[%s0 + $0x10] sm:$0xff]
    %v18 = vld [vmem:[%s0 + $0x18] sm:$0xff]
    %v19 = vld [vmem:[%s1] sm:$0xff]
    %v20 = vld [vmem:[%s1 + $0x8] sm:$0xff]
    %v21 = vld [vmem:[%s1 + $0x10] sm:$0xff]
    %v22 = vld [vmem:[%s1 + $0x18] sm:$0xff]
    %v23 = vld [vmem:[%s1 + $0x20] sm:$0xff]
    %v24 = vld [vmem:[%s1 + $0x28] sm:$0xff]
    %v25 = vld [vmem:[%s1 + $0x30] sm:$0xff]
    %v26 = vld [vmem:[%s1 + $0x38] sm:$0xff]
    %v27 = vld [vmem:[%s2] sm:$0x1]
    %v29 = vlaneseq
    %v30 = vshrl.u32 %v29, 7
    %v31 = vsub.s32 0, %v30
    %v32 = vrot.slane %v27, %v31
    %vm34 = vcmask 523264
    %v36 = vsel %vm34, %v15, 0
    %v39 = vsel %vm34, %v16, 0
    %v42 = vsel %vm34, %v17, 0
    %v45 = vsel %vm34, %v18, 0
    %47 = vmatprep.subr.mxu0 0.0
    %48 = vmatpush1.msra.mxu0 0.0
    %49 = vmatprep.subr.mxu0 0.0
    %50 = vmatpush1.msra.mxu0 0.0
    %51 = vmatprep.subr.mxu0 0.0
    %52 = vmatpush1.msra.mxu0 0.0
    %53 = vmatprep.subr.mxu0 0.0
    %54 = vmatpush1.msra.mxu0 0.0
    %55 = vmatprep.subr.mxu0 0.0
    %56 = vmatpush1.msra.mxu0 0.0
    %57 = vmatprep.subr.mxu0 0.0
    %58 = vmatpush1.msra.mxu0 0.0
    %59 = vmatprep.subr.mxu0 0.0
    %60 = vmatpush1.msra.mxu0 0.0
    %61 = vmatprep.subr.mxu0 0.0
    %62 = vmatpush1.msra.mxu0 0.0
    %63 = vmatprep.subr.mxu0 0.0
    %64 = vmatpush1.msra.mxu0 %v26
    %65 = vmatprep.subr.mxu0 0.0
    %66 = vmatpush1.msra.mxu0 %v25
    %67 = vmatprep.subr.mxu0 0.0
    %68 = vmatpush1.msra.mxu0 %v24
    %69 = vmatprep.subr.mxu0 0.0
    %70 = vmatpush1.msra.mxu0 %v23
    %71 = vmatprep.subr.mxu0 0.0
    %72 = vmatpush1.msra.mxu0 %v22
    %73 = vmatprep.subr.mxu0 0.0
    %74 = vmatpush1.msra.mxu0 %v21
    %75 = vmatprep.subr.mxu0 0.0
    %76 = vmatpush1.msra.mxu0 %v20
    %77 = vmatprep.subr.mxu0 0.0
    %78 = vmatpush1.msra.mxu0 %v19
    %79 = vmatprep.subr.mxu0 0.0
    %80 = vmatpush2.msra.mxu0 0.0
    %81 = vmatprep.subr.mxu0 0.0
    %82 = vmatpush2.msra.mxu0 0.0
    %83 = vmatprep.subr.mxu0 0.0
    %84 = vmatpush2.msra.mxu0 0.0
    %85 = vmatprep.subr.mxu0 0.0
    %86 = vmatpush2.msra.mxu0 0.0
    %87 = vmatprep.subr.mxu0 0.0
    %88 = vmatpush2.msra.mxu0 0.0
    %89 = vmatprep.subr.mxu0 0.0
    %90 = vmatpush2.msra.mxu0 0.0
    %91 = vmatprep.subr.mxu0 0.0
    %92 = vmatpush2.msra.mxu0 0.0
    %93 = vmatprep.subr.mxu0 0.0
    %94 = vmatpush2.msra.mxu0 0.0
    %95 = vmatprep.subr.mxu0 0.0
    %96 = vmatpush2.msra.mxu0 0.0
    %97 = vmatprep.subr.mxu0 0.0
    %98 = vmatpush2.msra.mxu0 0.0
    %99 = vmatprep.subr.mxu0 0.0
    %100 = vmatpush2.msra.mxu0 0.0
    %101 = vmatprep.subr.mxu0 0.0
    %102 = vmatpush2.msra.mxu0 0.0
    %103 = vmatprep.subr.mxu0 0.0
    %104 = vmatpush2.msra.mxu0 0.0
    %105 = vmatprep.subr.mxu0 0.0
    %106 = vmatpush2.msra.mxu0 0.0
    %107 = vmatprep.subr.mxu0 0.0
    %108 = vmatpush2.msra.mxu0 0.0
    %109 = vmatprep.subr.mxu0 0.0
    %110 = vmatpush2.msra.mxu0 0.0
    %111 = vmatprep.mubr.f32.mxu0 0.0
    %112 = vmatmul.mubr.f32.gmra.mxu0 %v36
    %v113 = vpop.f32.mrf.mxu0
    %v114 = vadd.f32 %v32, %v113
    %v115 = vpop.f32.mrf.mxu0
    %116 = vmatprep.mubr.f32.mxu0 0.0
    %117 = vmatmul.mubr.f32.gmra.mxu0 %v39
    %v118 = vpop.f32.mrf.mxu0
    %v119 = vadd.f32 %v32, %v118
    %v120 = vpop.f32.mrf.mxu0
    %121 = vmatprep.mubr.f32.mxu0 0.0
    %122 = vmatmul.mubr.f32.gmra.mxu0 %v42
    %v123 = vpop.f32.mrf.mxu0
    %v124 = vadd.f32 %v32, %v123
    %v125 = vpop.f32.mrf.mxu0
    %126 = vmatprep.mubr.f32.mxu0 0.0
    %127 = vmatmul.mubr.f32.gmra.mxu0 %v45
    %v128 = vpop.f32.mrf.mxu0
    %v129 = vadd.f32 %v32, %v128
    %v130 = vpop.f32.mrf.mxu0
    %131 = vdwg.mxu0
    %vm132 = vcmask 261120
    %133 = vst.msk [vmem:[#allocation2] sm:$0xff] %vm132, %v114
    %134 = vst.msk [vmem:[#allocation2 + $0x8] sm:$0xff] %vm132, %v119
    %135 = vst.msk [vmem:[#allocation2 + $0x10] sm:$0xff] %vm132, %v124
    %136 = vst.msk [vmem:[#allocation2 + $0x18] sm:$0xff] %vm132, %v129
    // Predicated region
    $region14: #{patch_embedding_forward.1} parent=1 // pred_check
      _
    $region15: #{patch_embedding_forward.1} parent=1 // pred_check_branch
      %138 = sbr.rel (0) target = $region17
    $region16: #{patch_embedding_forward.1} parent=1 // pred_region
      %s140 = ssub.s32 512, 512
      %141 = vsyncadd [#allocation3], %s140
      %s142 = sshll.u32 [#allocation2], 4
      %s143 = int_to_ptr.vmem [resolvable:$true] %s142
      %148 = dma.vmem_to_hbm [thread:$0]  %s143, 512, %s3, [#allocation3], 128, 128, 8
    $region17: #{patch_embedding_forward.1} parent=1 // pred_fallthru
      _
    // Predicated region
    $region18: #{patch_embedding_forward.1} parent=1 // pred_check
      _
    $region19: #{patch_embedding_forward.1} parent=1 // pred_check_branch
      %150 = sbr.rel (0) target = $region21
    $region20: #{patch_embedding_forward.1} parent=1 // pred_region
      %151 = dma.done [#allocation3], 512
    $region21: #{patch_embedding_forward.1} parent=1 // pred_fallthru
      _
    %152 = vsyncpa [#allocation3], 1

</llo_original>
